<compile_context>
chip_gen: v5e
topology: v5e:2x2
jax: 0.10.0
libtpu: 0.0.40
codegen_flags: <defaults>
</compile_context>

<pallas_src>
import functools

import jax
import jax.numpy as jnp
import numpy as np
from jax.experimental import pallas as pl
from jax.experimental.pallas import tpu as pltpu


def _dwconv_kernel(x_ref, w_ref, b_ref, o_ref, *, C, H):
    # x_ref: (R, W*C) with R = (images per block) * H; each image's rows are
    #        contiguous and image boundaries land on multiples of H.
    # w_ref: (9, W*C)   taps (row kh*3+kw), tiled over W in the wrapper.
    # b_ref: (1, W*C)   bias, tiled over W.
    # o_ref: (R, W*C)
    R, WC = o_ref.shape

    x = x_ref[...]                           # native dtype, single tile load
    wt = w_ref[...].astype(jnp.float32)      # (9, WC), hoisted tap load
    bias = b_ref[...].astype(jnp.float32)    # (1, WC)

    # Border masks.  The row mask also kills the roll wrap-around between the
    # images stacked inside this block (row % H handles every image boundary).
    row = jax.lax.broadcasted_iota(jnp.int32, (R, WC), 0) % H
    lane = jax.lax.broadcasted_iota(jnp.int32, (R, WC), 1)

    # Vertically shifted copies: x_up[r] == x[r-1], x_dn[r] == x[r+1], with the
    # per-image top/bottom row zeroed (SAME padding along H).  Rolls use the
    # XLU; masks are cheap VALU selects; nothing is materialized via concat.
    x_up = jnp.where(row == 0, 0, pltpu.roll(x, 1, axis=0))
    x_dn = jnp.where(row == H - 1, 0, pltpu.roll(x, R - 1, axis=0))

    acc = jnp.zeros((R, WC), jnp.float32)
    for kw in range(3):
        # Vertical MAC for this tap column; the x side stays in the input
        # dtype, the f32 taps promote the products, accumulation in f32.
        t = (x_up * wt[kw:kw + 1, :]
             + x * wt[3 + kw:4 + kw, :]
             + x_dn * wt[6 + kw:7 + kw, :])
        # Horizontal shift by (kw - 1) pixels == (kw - 1) * C lanes, zero fill
        # at the left/right image border (SAME padding along W).
        if kw == 0:      # dw = -1: out[w] takes in[w-1]
            t = jnp.where(lane < C, 0.0, pltpu.roll(t, C, axis=1))
        elif kw == 2:    # dw = +1: out[w] takes in[w+1]
            t = jnp.where(lane >= WC - C, 0.0, pltpu.roll(t, WC - C, axis=1))
        acc = acc + t

    o_ref[...] = (acc + bias).astype(o_ref.dtype)


def _pick_images_per_block(B, H, WC, itemsize, budget_bytes=1 << 20):
    """Whole images per grid step, sized to a small per-block VMEM budget."""
    per_img = max(1, H * WC * itemsize)
    bb = max(1, min(B, budget_bytes // per_img))
    while B % bb:
        bb -= 1
    # Block's sublane dim (bb*H) must be a multiple of 8 unless it spans the
    # whole array.
    if (bb * H) % 8 != 0 and bb != B:
        bb = B
    return bb


def dwconv_pallas(x, weight, bias, H, W):
    """x: (B, N, C) with N == H*W (row-major); weight: (3, 3, C); bias: (C,).

    Matches nn.Conv2d(dim, dim, 3, 1, 1, bias=True, groups=dim) applied to
    x.transpose(1,2).reshape(B,C,H,W), flattened back to (B, N, C).
    weight[kh, kw, c] == torch_weight[c, 0, kh, kw].
    """
    B, N, C = x.shape
    assert N == H * W
    WC = W * C

    # Lane-dense, channel-folded view.  Pure (free) reshape of contiguous data.
    x_f = x.reshape(B * H, WC)
    # w_f[kh*3 + kw, w*C + c] = weight[kh, kw, c]; b_f[0, w*C + c] = bias[c].
    w_f = jnp.tile(weight, (1, 1, W)).reshape(9, WC)
    b_f = jnp.tile(bias, (W,)).reshape(1, WC)

    bb = _pick_images_per_block(B, H, WC, x.dtype.itemsize)
    rows = bb * H
    grid = (B // bb,)

    kernel = functools.partial(_dwconv_kernel, C=C, H=H)

    out = pl.pallas_call(
        kernel,
        out_shape=jax.ShapeDtypeStruct((B * H, WC), x.dtype),
        grid=grid,
        in_specs=[
            pl.BlockSpec((rows, WC), lambda i: (i, 0)),
            pl.BlockSpec((9, WC), lambda i: (0, 0)),
            pl.BlockSpec((1, WC), lambda i: (0, 0)),
        ],
        out_specs=pl.BlockSpec((rows, WC), lambda i: (i, 0)),
        compiler_params=pltpu.CompilerParams(
            dimension_semantics=("parallel",),
            vmem_limit_bytes=32 * 1024 * 1024,
        ),
    )(x_f, w_f, b_f)

    return out.reshape(B, N, C)


def dwconv_reference(x, weight, bias, H, W):
    """Pure-JAX reference (lax depthwise conv) for correctness checking."""
    B, N, C = x.shape
    x_img = x.reshape(B, H, W, C)
    k = weight.reshape(3, 3, 1, C)  # HWIO with feature_group_count = C
    y = jax.lax.conv_general_dilated(
        x_img, k, window_strides=(1, 1), padding="SAME",
        dimension_numbers=("NHWC", "HWIO", "NHWC"),
        feature_group_count=C,
    )
    return (y + bias.reshape(1, 1, 1, C)).reshape(B, N, C)


if __name__ == "__main__":
    # Small shapes consistent with the module: B=2, C(dim)=8, H=W=16, N=256.
    # (C=8 keeps W*C = 128, i.e. a lane-dense, unmasked store width.)
    B, C, H, W = 2, 8, 16, 16
    N = H * W

    key = jax.random.PRNGKey(0)
    kx, kw_, kb = jax.random.split(key, 3)

    x = jax.random.normal(kx, (B, N, C), dtype=jnp.float32)
    # nn.Conv2d(dim, dim, 3, 1, 1, groups=dim) weight is (C, 1, 3, 3);
    # stored channels-last as (3, 3, C): w[kh, kw, c] == torch_w[c, 0, kh, kw].
    weight = jax.random.normal(kw_, (3, 3, C), dtype=jnp.float32) * 0.1
    bias = jax.random.normal(kb, (C,), dtype=jnp.float32) * 0.1

    out = dwconv_pallas(x, weight, bias, H, W)
    out = jax.block_until_ready(out)

    ref = dwconv_reference(x, weight, bias, H, W)
    np.testing.assert_allclose(np.asarray(out), np.asarray(ref), rtol=1e-5, atol=1e-5)

    print("KERNEL_OK")
</pallas_src>

<mosaic_0001>
module attributes {stable_mosaic.version = 11 : i64} {
  func.func @_dwconv_kernel(%arg0: i32, %arg1: memref<32x128xf32, #tpu.memory_space<vmem>>, %arg2: memref<9x128xf32, #tpu.memory_space<vmem>>, %arg3: memref<1x128xf32, #tpu.memory_space<vmem>>, %arg4: memref<32x128xf32, #tpu.memory_space<vmem>>) attributes {dimension_semantics = [#tpu.dimension_semantics<parallel>], iteration_bounds = array<i64: 1>, scalar_prefetch = 0 : i64, scratch_operands = 0 : i64, tpu.core_type = #tpu.core_type<tc>, window_params = [{transform_indices = @transform_0, window_bounds = array<i64: 32, 128>}, {pipeline_mode = #tpu.pipeline_mode<synchronous>, transform_indices = @transform_1, window_bounds = array<i64: 9, 128>}, {pipeline_mode = #tpu.pipeline_mode<synchronous>, transform_indices = @transform_2, window_bounds = array<i64: 1, 128>}, {transform_indices = @transform_3, window_bounds = array<i64: 32, 128>}]} {
    %c0 = arith.constant 0 : index
    %c0_0 = arith.constant 0 : index
    %0 = vector.load %arg1[%c0, %c0_0] : memref<32x128xf32, #tpu.memory_space<vmem>>, vector<32x128xf32>
    %c0_1 = arith.constant 0 : index
    %c0_2 = arith.constant 0 : index
    %1 = vector.load %arg2[%c0_1, %c0_2] : memref<9x128xf32, #tpu.memory_space<vmem>>, vector<9x128xf32>
    %c0_3 = arith.constant 0 : index
    %c0_4 = arith.constant 0 : index
    %2 = vector.load %arg3[%c0_3, %c0_4] : memref<1x128xf32, #tpu.memory_space<vmem>>, vector<1x128xf32>
    %3 = tpu.iota {dimensions = array<i32: 0>} : vector<32x128xi32>
    %c16_i32 = arith.constant 16 : i32
    %c0_i32 = arith.constant 0 : i32
    %4 = arith.cmpi eq, %c16_i32, %c0_i32 : i32
    %c1_i32 = arith.constant 1 : i32
    %5 = arith.select %4, %c1_i32, %c16_i32 : i32
    %6 = vector.broadcast %5 : i32 to vector<32x128xi32>
    %7 = arith.remsi %3, %6 : vector<32x128xi32>
    %c0_i32_5 = arith.constant 0 : i32
    %8 = vector.broadcast %c0_i32_5 : i32 to vector<32x128xi32>
    %9 = arith.cmpi ne, %7, %8 : vector<32x128xi32>
    %c0_i32_6 = arith.constant 0 : i32
    %10 = vector.broadcast %c0_i32_6 : i32 to vector<32x128xi32>
    %11 = arith.cmpi slt, %7, %10 : vector<32x128xi32>
    %c0_i32_7 = arith.constant 0 : i32
    %12 = arith.cmpi slt, %5, %c0_i32_7 : i32
    %13 = vector.broadcast %12 : i1 to vector<32x128xi1>
    %14 = vector.broadcast %13 : vector<32x128xi1> to vector<32x128xi1>
    %15 = arith.xori %11, %14 : vector<32x128xi1>
    %16 = arith.andi %15, %9 : vector<32x128xi1>
    %17 = vector.broadcast %5 : i32 to vector<32x128xi32>
    %18 = arith.addi %7, %17 : vector<32x128xi32>
    %19 = arith.select %16, %18, %7 : vector<32x128xi1>, vector<32x128xi32>
    %20 = tpu.iota {dimensions = array<i32: 1>} : vector<32x128xi32>
    %c0_i32_8 = arith.constant 0 : i32
    %21 = vector.broadcast %c0_i32_8 : i32 to vector<32x128xi32>
    %22 = arith.cmpi eq, %19, %21 : vector<32x128xi32>
    %c1_i32_9 = arith.constant 1 : i32
    %23 = tpu.dynamic_rotate %0 by %c1_i32_9 dim 0 : vector<32x128xf32>, i32 -> vector<32x128xf32>
    %c0_i32_10 = arith.constant 0 : i32
    %24 = arith.sitofp %c0_i32_10 : i32 to f32
    %25 = vector.broadcast %24 : f32 to vector<32x128xf32>
    %26 = arith.select %22, %25, %23 : vector<32x128xi1>, vector<32x128xf32>
    %c15_i32 = arith.constant 15 : i32
    %27 = vector.broadcast %c15_i32 : i32 to vector<32x128xi32>
    %28 = arith.cmpi eq, %19, %27 : vector<32x128xi32>
    %c31_i32 = arith.constant 31 : i32
    %29 = tpu.dynamic_rotate %0 by %c31_i32 dim 0 : vector<32x128xf32>, i32 -> vector<32x128xf32>
    %c0_i32_11 = arith.constant 0 : i32
    %30 = arith.sitofp %c0_i32_11 : i32 to f32
    %31 = vector.broadcast %30 : f32 to vector<32x128xf32>
    %32 = arith.select %28, %31, %29 : vector<32x128xi1>, vector<32x128xf32>
    %cst = arith.constant 0.000000e+00 : f32
    %33 = vector.broadcast %cst : f32 to vector<32x128xf32>
    %34 = vector.extract_strided_slice %1 {offsets = [0, 0], sizes = [1, 128], strides = [1, 1]} : vector<9x128xf32> to vector<1x128xf32>
    %35 = vector.broadcast %34 : vector<1x128xf32> to vector<32x128xf32>
    %36 = arith.mulf %26, %35 : vector<32x128xf32>
    %37 = vector.extract_strided_slice %1 {offsets = [3, 0], sizes = [1, 128], strides = [1, 1]} : vector<9x128xf32> to vector<1x128xf32>
    %38 = vector.broadcast %37 : vector<1x128xf32> to vector<32x128xf32>
    %39 = arith.mulf %0, %38 : vector<32x128xf32>
    %40 = arith.addf %36, %39 : vector<32x128xf32>
    %41 = vector.extract_strided_slice %1 {offsets = [6, 0], sizes = [1, 128], strides = [1, 1]} : vector<9x128xf32> to vector<1x128xf32>
    %42 = vector.broadcast %41 : vector<1x128xf32> to vector<32x128xf32>
    %43 = arith.mulf %32, %42 : vector<32x128xf32>
    %44 = arith.addf %40, %43 : vector<32x128xf32>
    %c8_i32 = arith.constant 8 : i32
    %45 = vector.broadcast %c8_i32 : i32 to vector<32x128xi32>
    %46 = arith.cmpi slt, %20, %45 : vector<32x128xi32>
    %c8_i32_12 = arith.constant 8 : i32
    %47 = tpu.dynamic_rotate %44 by %c8_i32_12 dim 1 : vector<32x128xf32>, i32 -> vector<32x128xf32>
    %cst_13 = arith.constant 0.000000e+00 : f32
    %48 = vector.broadcast %cst_13 : f32 to vector<32x128xf32>
    %49 = arith.select %46, %48, %47 : vector<32x128xi1>, vector<32x128xf32>
    %50 = arith.addf %33, %49 : vector<32x128xf32>
    %51 = vector.extract_strided_slice %1 {offsets = [1, 0], sizes = [1, 128], strides = [1, 1]} : vector<9x128xf32> to vector<1x128xf32>
    %52 = vector.broadcast %51 : vector<1x128xf32> to vector<32x128xf32>
    %53 = arith.mulf %26, %52 : vector<32x128xf32>
    %54 = vector.extract_strided_slice %1 {offsets = [4, 0], sizes = [1, 128], strides = [1, 1]} : vector<9x128xf32> to vector<1x128xf32>
    %55 = vector.broadcast %54 : vector<1x128xf32> to vector<32x128xf32>
    %56 = arith.mulf %0, %55 : vector<32x128xf32>
    %57 = arith.addf %53, %56 : vector<32x128xf32>
    %58 = vector.extract_strided_slice %1 {offsets = [7, 0], sizes = [1, 128], strides = [1, 1]} : vector<9x128xf32> to vector<1x128xf32>
    %59 = vector.broadcast %58 : vector<1x128xf32> to vector<32x128xf32>
    %60 = arith.mulf %32, %59 : vector<32x128xf32>
    %61 = arith.addf %57, %60 : vector<32x128xf32>
    %62 = arith.addf %50, %61 : vector<32x128xf32>
    %63 = vector.extract_strided_slice %1 {offsets = [2, 0], sizes = [1, 128], strides = [1, 1]} : vector<9x128xf32> to vector<1x128xf32>
    %64 = vector.broadcast %63 : vector<1x128xf32> to vector<32x128xf32>
    %65 = arith.mulf %26, %64 : vector<32x128xf32>
    %66 = vector.extract_strided_slice %1 {offsets = [5, 0], sizes = [1, 128], strides = [1, 1]} : vector<9x128xf32> to vector<1x128xf32>
    %67 = vector.broadcast %66 : vector<1x128xf32> to vector<32x128xf32>
    %68 = arith.mulf %0, %67 : vector<32x128xf32>
    %69 = arith.addf %65, %68 : vector<32x128xf32>
    %70 = vector.extract_strided_slice %1 {offsets = [8, 0], sizes = [1, 128], strides = [1, 1]} : vector<9x128xf32> to vector<1x128xf32>
    %71 = vector.broadcast %70 : vector<1x128xf32> to vector<32x128xf32>
    %72 = arith.mulf %32, %71 : vector<32x128xf32>
    %73 = arith.addf %69, %72 : vector<32x128xf32>
    %c120_i32 = arith.constant 120 : i32
    %74 = vector.broadcast %c120_i32 : i32 to vector<32x128xi32>
    %75 = arith.cmpi sge, %20, %74 : vector<32x128xi32>
    %c120_i32_14 = arith.constant 120 : i32
    %76 = tpu.dynamic_rotate %73 by %c120_i32_14 dim 1 : vector<32x128xf32>, i32 -> vector<32x128xf32>
    %cst_15 = arith.constant 0.000000e+00 : f32
    %77 = vector.broadcast %cst_15 : f32 to vector<32x128xf32>
    %78 = arith.select %75, %77, %76 : vector<32x128xi1>, vector<32x128xf32>
    %79 = arith.addf %62, %78 : vector<32x128xf32>
    %80 = vector.broadcast %2 : vector<1x128xf32> to vector<32x128xf32>
    %81 = arith.addf %79, %80 : vector<32x128xf32>
    %c0_16 = arith.constant 0 : index
    %c0_17 = arith.constant 0 : index
    %82 = vector.load %arg4[%c0_16, %c0_17] : memref<32x128xf32, #tpu.memory_space<vmem>>, vector<32x128xf32>
    tpu.vector_store %arg4[%c0_16, %c0_17], %81 {strides = array<i32>} : memref<32x128xf32, #tpu.memory_space<vmem>>, vector<32x128xf32>,
    return
  }
  func.func @transform_0(%arg0: i32) -> (i32, i32) {
    %c0_i32 = arith.constant 0 : i32
    %c0_i32_0 = arith.constant 0 : i32
    return %arg0, %c0_i32 : i32, i32
  }
  func.func @transform_1(%arg0: i32) -> (i32, i32) {
    %c0_i32 = arith.constant 0 : i32
    %c0_i32_0 = arith.constant 0 : i32
    %c0_i32_1 = arith.constant 0 : i32
    return %c0_i32, %c0_i32_0 : i32, i32
  }
  func.func @transform_2(%arg0: i32) -> (i32, i32) {
    %c0_i32 = arith.constant 0 : i32
    %c0_i32_0 = arith.constant 0 : i32
    %c0_i32_1 = arith.constant 0 : i32
    return %c0_i32, %c0_i32_0 : i32, i32
  }
  func.func @transform_3(%arg0: i32) -> (i32, i32) {
    %c0_i32 = arith.constant 0 : i32
    %c0_i32_0 = arith.constant 0 : i32
    return %arg0, %c0_i32 : i32, i32
  }
}

</mosaic_0001>

<llo_original>
// kernel: tpu_custom_call.1
$region0: #{tpu_custom_call.1}
  #allocation0 [shape = 'u32[]', space=smem, size = 0x4, offset = 0x4, fixed_abs, tag = 'smem constant byte address 0x4 - core index']
  #allocation1 [shape = 'u32[72,128]{1,0:T(1,128)}', space=vmem, size = 0x9000, scoped, tag = 'internal scratch']
  %s0 = inlined_call_operand.hbm [shape: f32[32,128], index: 0, kind: input, shape index: {}]
  %s1 = inlined_call_operand.hbm [shape: f32[9,128], index: 1, kind: input, shape index: {}]
  %s2 = inlined_call_operand.vmem [shape: f32[1,128], index: 2, kind: input, shape index: {}]
  %s3 = inlined_call_operand.hbm [shape: f32[32,128], index: 3, kind: output, shape index: {}]
  %s4 = sld [smem:[#allocation0]]
  $region30: #{tpu_custom_call.1} parent=0
    _
  %s6 = ssub.s32 1, %s4
  %s7 = scalar_select 0, %s6, %s4
  $region1: #{tpu_custom_call.1} parent=0
    #allocation2 [shape = 'u8[16384]{0}', space=vmem, size = 0x4000, scoped, tag = 'input window, operand 0, single buffered']
    #allocation3 [shape = 's32[1]{0}', space=sflag, size = 0x4, scoped, tag = 'scoped memory for tpu_custom_call.1']
    #allocation4 [shape = 's32[1]{0}', space=sflag, size = 0x4, scoped, tag = 'scoped memory for tpu_custom_call.1']
    #allocation5 [shape = 'u8[8192]{0}', space=vmem, size = 0x2000, scoped, tag = 'input window, operand 1, single buffered']
    #allocation6 [shape = 's32[1]{0}', space=sflag, size = 0x4, scoped, tag = 'scoped memory for tpu_custom_call.1']
    #allocation7 [shape = 'u8[16384]{0}', space=vmem, size = 0x4000, scoped, tag = 'output window, operand 0, single buffered']
    %8 = vsyncpa [#allocation3], 0
    %9 = vsyncpa [#allocation6], 0
    %10 = vsyncpa [#allocation4], 0
    // Predicated region
    $region2: #{tpu_custom_call.1} parent=1 // pred_check
      _
    $region3: #{tpu_custom_call.1} parent=1 // pred_check_branch
      %12 = sbr.rel (0) target = $region5
    $region4: #{tpu_custom_call.1} parent=1 // pred_region
      %14 = vsyncadd [#allocation3], 0
      %s15 = sshll.u32 %s0, 4
      %s16 = int_to_ptr.hbm [resolvable:$true] %s15
      %s17 = sshll.u32 [#allocation2], 4
      %s18 = int_to_ptr.vmem [resolvable:$true] %s17
      %23 = dma.hbm_to_vmem [thread:$0]  %s16, 512, %s18, [#allocation3], 128, 128, 8
    $region5: #{tpu_custom_call.1} parent=1 // pred_fallthru
      _
    // Predicated region
    $region6: #{tpu_custom_call.1} parent=1 // pred_check
      _
    $region7: #{tpu_custom_call.1} parent=1 // pred_check_branch
      %25 = sbr.rel (0) target = $region9
    $region8: #{tpu_custom_call.1} parent=1 // pred_region
      %27 = vsyncadd [#allocation6], 0
      %s28 = sshll.u32 %s1, 4
      %s29 = int_to_ptr.hbm [resolvable:$true] %s28
      %s30 = sshll.u32 [#allocation5], 4
      %s31 = int_to_ptr.vmem [resolvable:$true] %s30
      %36 = dma.hbm_to_vmem [thread:$0]  %s29, 256, %s31, [#allocation6], 128, 128, 8
    $region9: #{tpu_custom_call.1} parent=1 // pred_fallthru
      _
    // Predicated region
    $region10: #{tpu_custom_call.1} parent=1 // pred_check
      _
    $region11: #{tpu_custom_call.1} parent=1 // pred_check_branch
      %38 = sbr.rel (0) target = $region13
    $region12: #{tpu_custom_call.1} parent=1 // pred_region
      _
    $region13: #{tpu_custom_call.1} parent=1 // pred_fallthru
      _
    // Predicated region
    $region14: #{tpu_custom_call.1} parent=1 // pred_check
      _
    $region15: #{tpu_custom_call.1} parent=1 // pred_check_branch
      %40 = sbr.rel (0) target = $region17
    $region16: #{tpu_custom_call.1} parent=1 // pred_region
      %42 = dma.done [#allocation3], 512
    $region17: #{tpu_custom_call.1} parent=1 // pred_fallthru
      _
    // Predicated region
    $region18: #{tpu_custom_call.1} parent=1 // pred_check
      _
    $region19: #{tpu_custom_call.1} parent=1 // pred_check_branch
      %44 = sbr.rel (0) target = $region21
    $region20: #{tpu_custom_call.1} parent=1 // pred_region
      %46 = dma.done [#allocation6], 256
    $region21: #{tpu_custom_call.1} parent=1 // pred_fallthru
      _
    %v47 = vld [vmem:[#allocation2] sm:$0xff]
    %v48 = vld [vmem:[#allocation2 + $0x8] sm:$0xff]
    %v49 = vld [vmem:[#allocation2 + $0x10] sm:$0xff]
    %v50 = vld [vmem:[#allocation2 + $0x18] sm:$0xff]
    %v51 = vld [vmem:[#allocation5] sm:$0xff]
    %v52 = vld [vmem:[#allocation5 + $0x8] sm:$0x1]
    %v53 = vld [vmem:[%s2] sm:$0x1]
    %v54 = vlaneseq
    %v55 = vshrl.u32 %v54, 7
    %v56 = vadd.s32 %v55, 8
    %v57 = vadd.s32 %v55, 16
    %v58 = vadd.s32 %v55, 24
    %vm59 = vcmp.lt.s32.totalorder %v55, 0
    %v60 = vsub.s32 0, %v55
    %v61 = vsel %vm59, %v60, %v55
    %v62 = vshrl.u32 %v61, 4
    %v63 = vand.u32 %v61, 15
    %v64 = vsub.s32 0, %v63
    %v65 = vsel %vm59, %v64, %v63
    %vm66 = vcmp.lt.s32.totalorder %v56, 0
    %v67 = vsub.s32 0, %v56
    %v68 = vsel %vm66, %v67, %v56
    %v69 = vshrl.u32 %v68, 4
    %v70 = vand.u32 %v68, 15
    %v71 = vsub.s32 0, %v70
    %v72 = vsel %vm66, %v71, %v70
    %vm73 = vcmp.lt.s32.totalorder %v57, 0
    %v74 = vsub.s32 0, %v57
    %v75 = vsel %vm73, %v74, %v57
    %v76 = vshrl.u32 %v75, 4
    %v77 = vand.u32 %v75, 15
    %v78 = vsub.s32 0, %v77
    %v79 = vsel %vm73, %v78, %v77
    %vm80 = vcmp.lt.s32.totalorder %v58, 0
    %v81 = vsub.s32 0, %v58
    %v82 = vsel %vm80, %v81, %v58
    %v83 = vshrl.u32 %v82, 4
    %v84 = vand.u32 %v82, 15
    %v85 = vsub.s32 0, %v84
    %v86 = vsel %vm80, %v85, %v84
    %vm87 = vcmp.ne.s32.totalorder %v65, 0
    %vm88 = vcmp.ne.s32.totalorder %v72, 0
    %vm89 = vcmp.ne.s32.totalorder %v79, 0
    %vm90 = vcmp.ne.s32.totalorder %v86, 0
    %vm91 = vcmp.lt.s32.totalorder %v65, 0
    %vm92 = vcmp.lt.s32.totalorder %v72, 0
    %vm93 = vcmp.lt.s32.totalorder %v79, 0
    %vm94 = vcmp.lt.s32.totalorder %v86, 0
    %vm95 = vmand %vm91, %vm87
    %vm96 = vmand %vm92, %vm88
    %vm97 = vmand %vm93, %vm89
    %vm98 = vmand %vm94, %vm90
    %v99 = vadd.s32 %v65, 16
    %v100 = vadd.s32 %v72, 16
    %v101 = vadd.s32 %v79, 16
    %v102 = vadd.s32 %v86, 16
    %v103 = vsel %vm95, %v99, %v65
    %v104 = vsel %vm96, %v100, %v72
    %v105 = vsel %vm97, %v101, %v79
    %v106 = vsel %vm98, %v102, %v86
    %v107 = vlaneseq
    %v108 = vand.u32 %v107, 127
    %vm109 = vcmp.eq.s32.totalorder %v103, 0
    %vm110 = vcmp.eq.s32.totalorder %v104, 0
    %vm111 = vcmp.eq.s32.totalorder %v105, 0
    %vm112 = vcmp.eq.s32.totalorder %v106, 0
    %v113 = vrot.slane %v47, 7
    %v114 = vrot.slane %v48, 7
    %v115 = vrot.slane %v49, 7
    %v116 = vrot.slane %v50, 7
    %vm117 = vcmp.lt.s32.totalorder %v55, 1
    %v118 = vsel %vm117, %v115, %v116
    %v119 = vsel %vm117, %v114, %v115
    %v120 = vsel %vm117, %v113, %v114
    %v121 = vsel %vm117, %v116, %v113
    %v122 = vsel %vm109, 0.0, %v121
    %v123 = vsel %vm110, 0.0, %v120
    %v124 = vsel %vm111, 0.0, %v119
    %v125 = vsel %vm112, 0.0, %v118
    %vm126 = vcmp.eq.s32.totalorder %v103, 15
    %vm127 = vcmp.eq.s32.totalorder %v104, 15
    %vm128 = vcmp.eq.s32.totalorder %v105, 15
    %vm129 = vcmp.eq.s32.totalorder %v106, 15
    %v130 = vrot.slane %v47, 1
    %v131 = vrot.slane %v48, 1
    %v132 = vrot.slane %v49, 1
    %v133 = vrot.slane %v50, 1
    %vm134 = vcmp.lt.s32.totalorder %v55, 7
    %v135 = vsel %vm134, %v132, %v133
    %v136 = vsel %vm134, %v131, %v132
    %v137 = vsel %vm134, %v130, %v131
    %v138 = vsel %vm134, %v133, %v130
    %v139 = vsel %vm126, 0.0, %v137
    %v140 = vsel %vm127, 0.0, %v136
    %v141 = vsel %vm128, 0.0, %v135
    %v142 = vsel %vm129, 0.0, %v138
    %v143 = vperm.slane %v51, 0
    %v144 = vmul.f32 %v122, %v143
    %v145 = vmul.f32 %v123, %v143
    %v146 = vmul.f32 %v124, %v143
    %v147 = vmul.f32 %v125, %v143
    %v148 = vperm.slane %v51, 3
    %v149 = vmul.f32 %v47, %v148
    %v150 = vmul.f32 %v48, %v148
    %v151 = vmul.f32 %v49, %v148
    %v152 = vmul.f32 %v50, %v148
    %v153 = vadd.f32 %v144, %v149
    %v154 = vadd.f32 %v145, %v150
    %v155 = vadd.f32 %v146, %v151
    %v156 = vadd.f32 %v147, %v152
    %v157 = vperm.slane %v51, 6
    %v158 = vmul.f32 %v139, %v157
    %v159 = vmul.f32 %v140, %v157
    %v160 = vmul.f32 %v141, %v157
    %v161 = vmul.f32 %v142, %v157
    %v162 = vadd.f32 %v153, %v158
    %v163 = vadd.f32 %v154, %v159
    %v164 = vadd.f32 %v155, %v160
    %v165 = vadd.f32 %v156, %v161
    %vm166 = vcmp.lt.s32.totalorder %v108, 8
    %167 = vrot.lane.b32.xlu0 %v162, 8
    %v168 = vpop.permute.xlu0 %167
    %169 = vrot.lane.b32.xlu0 %v163, 8
    %v170 = vpop.permute.xlu0 %169
    %171 = vrot.lane.b32.xlu0 %v164, 8
    %v172 = vpop.permute.xlu0 %171
    %173 = vrot.lane.b32.xlu0 %v165, 8
    %v174 = vpop.permute.xlu0 %173
    %v175 = vsel %vm166, 0.0, %v168
    %v176 = vsel %vm166, 0.0, %v170
    %v177 = vsel %vm166, 0.0, %v172
    %v178 = vsel %vm166, 0.0, %v174
    %v179 = vadd.f32 %v175, 0.0
    %v180 = vadd.f32 %v176, 0.0
    %v181 = vadd.f32 %v177, 0.0
    %v182 = vadd.f32 %v178, 0.0
    %v183 = vperm.slane %v51, 1
    %v184 = vmul.f32 %v122, %v183
    %v185 = vmul.f32 %v123, %v183
    %v186 = vmul.f32 %v124, %v183
    %v187 = vmul.f32 %v125, %v183
    %v188 = vperm.slane %v51, 4
    %v189 = vmul.f32 %v47, %v188
    %v190 = vmul.f32 %v48, %v188
    %v191 = vmul.f32 %v49, %v188
    %v192 = vmul.f32 %v50, %v188
    %v193 = vadd.f32 %v184, %v189
    %v194 = vadd.f32 %v185, %v190
    %v195 = vadd.f32 %v186, %v191
    %v196 = vadd.f32 %v187, %v192
    %v197 = vperm.slane %v51, 7
    %v198 = vmul.f32 %v139, %v197
    %v199 = vmul.f32 %v140, %v197
    %v200 = vmul.f32 %v141, %v197
    %v201 = vmul.f32 %v142, %v197
    %v202 = vadd.f32 %v193, %v198
    %v203 = vadd.f32 %v194, %v199
    %v204 = vadd.f32 %v195, %v200
    %v205 = vadd.f32 %v196, %v201
    %v206 = vadd.f32 %v179, %v202
    %v207 = vadd.f32 %v180, %v203
    %v208 = vadd.f32 %v181, %v204
    %v209 = vadd.f32 %v182, %v205
    %v210 = vperm.slane %v51, 2
    %v211 = vmul.f32 %v122, %v210
    %v212 = vmul.f32 %v123, %v210
    %v213 = vmul.f32 %v124, %v210
    %v214 = vmul.f32 %v125, %v210
    %v215 = vperm.slane %v51, 5
    %v216 = vmul.f32 %v47, %v215
    %v217 = vmul.f32 %v48, %v215
    %v218 = vmul.f32 %v49, %v215
    %v219 = vmul.f32 %v50, %v215
    %v220 = vadd.f32 %v211, %v216
    %v221 = vadd.f32 %v212, %v217
    %v222 = vadd.f32 %v213, %v218
    %v223 = vadd.f32 %v214, %v219
    %v224 = vperm.slane %v52, 0
    %v225 = vmul.f32 %v139, %v224
    %v226 = vmul.f32 %v140, %v224
    %v227 = vmul.f32 %v141, %v224
    %v228 = vmul.f32 %v142, %v224
    %v229 = vadd.f32 %v220, %v225
    %v230 = vadd.f32 %v221, %v226
    %v231 = vadd.f32 %v222, %v227
    %v232 = vadd.f32 %v223, %v228
    %vm233 = vcmp.ge.s32.totalorder %v108, 120
    %234 = vrot.lane.b32.xlu0 %v229, 120
    %v235 = vpop.permute.xlu0 %234
    %236 = vrot.lane.b32.xlu0 %v230, 120
    %v237 = vpop.permute.xlu0 %236
    %238 = vrot.lane.b32.xlu0 %v231, 120
    %v239 = vpop.permute.xlu0 %238
    %240 = vrot.lane.b32.xlu0 %v232, 120
    %v241 = vpop.permute.xlu0 %240
    %v242 = vsel %vm233, 0.0, %v235
    %v243 = vsel %vm233, 0.0, %v237
    %v244 = vsel %vm233, 0.0, %v239
    %v245 = vsel %vm233, 0.0, %v241
    %v246 = vadd.f32 %v206, %v242
    %v247 = vadd.f32 %v207, %v243
    %v248 = vadd.f32 %v208, %v244
    %v249 = vadd.f32 %v209, %v245
    %v251 = vperm.slane %v53, 0
    %v253 = vadd.f32 %v246, %v251
    %v254 = vadd.f32 %v247, %v251
    %v255 = vadd.f32 %v248, %v251
    %v256 = vadd.f32 %v249, %v251
    %257 = vst [vmem:[#allocation7] sm:$0xff] %v253
    %258 = vst [vmem:[#allocation7 + $0x8] sm:$0xff] %v254
    %259 = vst [vmem:[#allocation7 + $0x10] sm:$0xff] %v255
    %260 = vst [vmem:[#allocation7 + $0x18] sm:$0xff] %v256
    // Predicated region
    $region22: #{tpu_custom_call.1} parent=1 // pred_check
      _
    $region23: #{tpu_custom_call.1} parent=1 // pred_check_branch
      %262 = sbr.rel (0) target = $region25
    $region24: #{tpu_custom_call.1} parent=1 // pred_region
      %264 = vsyncadd [#allocation4], 0
      %s265 = sshll.u32 [#allocation7], 4
      %s266 = int_to_ptr.vmem [resolvable:$true] %s265
      %s267 = sshll.u32 %s3, 4
      %s268 = int_to_ptr.hbm [resolvable:$true] %s267
      %273 = dma.vmem_to_hbm [thread:$0]  %s266, 512, %s268, [#allocation4], 128, 128, 8
    $region25: #{tpu_custom_call.1} parent=1 // pred_fallthru
      _
    // Predicated region
    $region26: #{tpu_custom_call.1} parent=1 // pred_check
      _
    $region27: #{tpu_custom_call.1} parent=1 // pred_check_branch
      %275 = sbr.rel (0) target = $region29
    $region28: #{tpu_custom_call.1} parent=1 // pred_region
      %277 = dma.done [#allocation4], 512
    $region29: #{tpu_custom_call.1} parent=1 // pred_fallthru
      _
    %278 = vsyncpa [#allocation3], 1
    %279 = vsyncpa [#allocation6], 1
    %280 = vsyncpa [#allocation4], 1

</llo_original>
